<compile_context>
chip_gen: v6e
topology: v6e:2x2x1
jax: 0.10.0
libtpu: 0.0.40
codegen_flags: <defaults>
</compile_context>

<pallas_src>
import jax
import jax.numpy as jnp
from jax.experimental import pallas as pl
from jax.experimental.pallas import tpu as pltpu


def _identity(data: jax.Array) -> jax.Array:
    # TODO(synk): Discriminator.forward is abstract (NotImplementedError) and
    # Autoencoder.encode is undefined in the spec; the wrapper itself performs
    # no arithmetic, so the default stand-in is an exact zero-cost identity.
    return data


def _dma_copy_kernel(x_hbm_ref, o_hbm_ref, sem):
    # Direct HBM -> HBM DMA.  No VMEM round trip, no per-vreg vld/vst work:
    # the copy is a single descriptor that streams at HBM bandwidth.
    cp = pltpu.make_async_copy(x_hbm_ref, o_hbm_ref, sem)
    cp.start()
    cp.wait()


@jax.jit
def pallas_copy(x: jax.Array) -> jax.Array:
    """Materializing copy (fresh HBM buffer) as one HBM->HBM DMA.

    Used when an injected sub-module explicitly needs a new buffer; the
    default wrapper path never calls this (it returns the input directly).
    Works for any shape/dtype — no (8,128) block constraint applies because
    both operands stay in HBM (memory_space=pl.ANY) and the DMA engine copies
    the full rectangle.
    """
    nbytes = x.size * x.dtype.itemsize
    return pl.pallas_call(
        _dma_copy_kernel,
        out_shape=jax.ShapeDtypeStruct(x.shape, x.dtype),
        in_specs=[pl.BlockSpec(memory_space=pl.ANY)],
        out_specs=pl.BlockSpec(memory_space=pl.ANY),
        scratch_shapes=[pltpu.SemaphoreType.DMA],
        cost_estimate=pl.CostEstimate(
            flops=0, transcendentals=0, bytes_accessed=2 * nbytes),
    )(x)


class EncoderDiscriminator:
    """JAX/Pallas port of nn_architecture.models.EncoderDiscriminator.

    Pure wrapper: composes an injected discriminator with an injected
    encoder's `encode`, gated by the `encode` flag.  Owns no parameters.
    Concrete Pallas discriminator / encoder kernels are injected via the
    constructor; the defaults are zero-cost identities.
    """

    def __init__(self, discriminator_fn=None, encoder_encode_fn=None):
        self.discriminator_fn = (
            discriminator_fn if discriminator_fn is not None else _identity
        )
        self.encoder_encode_fn = (
            encoder_encode_fn if encoder_encode_fn is not None else _identity
        )
        self.encode = True
        # Mirror the reference: read optional attributes off the (substituted)
        # discriminator; callables without them yield None.
        self.channels = getattr(self.discriminator_fn, "channels", None)
        self.n_classes = getattr(self.discriminator_fn, "n_classes", None)

    def encode_input(self, mode: bool = True):
        self.encode = mode

    def __call__(self, data: jax.Array) -> jax.Array:
        d_out = self.discriminator_fn(data)
        if self.encode:
            return self.encoder_encode_fn(d_out)
        return d_out


if __name__ == "__main__":
    key = jax.random.PRNGKey(0)
    data = jax.random.normal(key, (2, 4, 16, 16), dtype=jnp.float32)

    # --- Default wrapper: zero-cost identity sub-modules -------------------
    model = EncoderDiscriminator()

    # encode=True path: encoder.encode(discriminator(data))
    y = jax.block_until_ready(model(data))
    assert y.shape == data.shape and y.dtype == data.dtype
    assert bool(jnp.allclose(y, data)), "encode=True pass-through mismatch"

    # encode=False path: discriminator(data) only
    model.encode_input(False)
    y2 = jax.block_until_ready(model(data))
    assert y2.shape == data.shape and y2.dtype == data.dtype
    assert bool(jnp.allclose(y2, data)), "encode=False pass-through mismatch"

    # --- Injected Pallas kernel path (exercises the HBM->HBM DMA copy) -----
    model_k = EncoderDiscriminator(discriminator_fn=pallas_copy)
    model_k.encode_input(True)
    y3 = jax.block_until_ready(model_k(data))
    assert y3.shape == data.shape and y3.dtype == data.dtype
    assert bool(jnp.allclose(y3, data)), "injected Pallas copy mismatch"

    model_k.encode_input(False)
    y4 = jax.block_until_ready(model_k(data))
    assert bool(jnp.allclose(y4, data)), "injected Pallas copy (no-encode) mismatch"

    print("KERNEL_OK")
</pallas_src>

<mosaic_0001>
module attributes {stable_mosaic.version = 11 : i64} {
  func.func @_dma_copy_kernel(%arg0: memref<2x4x16x16xf32, #tpu.memory_space<any>>, %arg1: memref<2x4x16x16xf32, #tpu.memory_space<any>>, %arg2: memref<!tpu.dma_semaphore, #tpu.memory_space<semaphore_mem>>) attributes {dimension_semantics = [], scalar_prefetch = 0 : i64, scratch_operands = 1 : i64, tpu.core_type = #tpu.core_type<tc>} {
    tpu.enqueue_dma source(%arg0 : memref<2x4x16x16xf32, #tpu.memory_space<any>>) target(%arg1 : memref<2x4x16x16xf32, #tpu.memory_space<any>>) target_semaphore(%arg2 : memref<!tpu.dma_semaphore, #tpu.memory_space<semaphore_mem>>)
    tpu.wait_dma2 semaphore(%arg2 : memref<!tpu.dma_semaphore, #tpu.memory_space<semaphore_mem>>) src(%arg0 : memref<2x4x16x16xf32, #tpu.memory_space<any>>) dst(%arg1 : memref<2x4x16x16xf32, #tpu.memory_space<any>>)
    return
  }
}

</mosaic_0001>

<llo_original>
// kernel: pallas_copy.1
$region0: #{pallas_copy.1}
  #allocation0 [shape = 'u32[]', space=smem, size = 0x4, offset = 0x4, fixed_abs, tag = 'smem constant byte address 0x4 - core index']
  #allocation1 [shape = 'u32[144,128]{1,0:T(1,128)}', space=vmem, size = 0x12000, scoped, tag = 'internal scratch']
  #allocation2 [shape = 's32[1]{0}', space=sflag, size = 0x4, scoped, tag = 'scratch operand']
  #allocation3 [shape = 's32[]', space=sflag, size = 0x4, offset = 0, fixed_abs, tag = 'sflag constant byte address 0x0 - dummy sync flag']
  #allocation4 [shape = 'u32[0]{0}', space=smem, size = 0, offset = 0, fixed_abs, tag = 'smem constant byte address 0x0 - null']
  %s0 = inlined_call_operand.hbm [shape: f32[2,4,16,16], index: 0, kind: input, shape index: {}]
  %s1 = inlined_call_operand.hbm [shape: f32[2,4,16,16], index: 1, kind: output, shape index: {}]
  %s2 = sld [smem:[#allocation0]]
  $region2: #{pallas_copy.1} parent=0
    _
  %s4 = ssub.s32 1, %s2
  %s5 = scalar_select 0, %s4, %s2
  %s7 = sshll.u32 1, 14
  %s8 = sxor.u32 4294967295, %s7
  %12 = dma.general %s0, 2048, %s1, [#allocation2], 131072, [#allocation4], 0, 0
  %s13 = smul.u32 2, 4
  %s14 = smul.u32 %s13, 16
  %s15 = smul.u32 %s14, 1
  %s16 = sshll.u32 %s15, 4
  %17 = dma.done [#allocation2], %s16
  %18 = vsyncmov [#allocation2]
  %s19 = vpop.sfrf %18
  %p20 = scmp.eq.s32.totalorder %s19, 0
  %p21 = pneg %p20
  %23 = shalt.err (%p21)

</llo_original>
